<compile_context>
chip_gen: v7x
topology: tpu7x:2x2x1
jax: 0.10.0
libtpu: 0.0.40
codegen_flags: <defaults>
</compile_context>

<pallas_src>
import numpy as np
import jax
import jax.numpy as jnp
from jax import lax
from jax.experimental import pallas as pl
from jax.experimental.pallas import tpu as pltpu


def _round8(n):
    return ((int(n) + 7) // 8) * 8


def _check_left_contiguous(mask):
    # The reference mention-score math is only finite for left-contiguous
    # attention masks; check eagerly when the mask is concrete.
    try:
        m = np.asarray(mask).astype(bool)
    except Exception:
        return
    assert np.all(m[:, :-1] >= m[:, 1:]), "mask_ctxt must be left-contiguous"


# --------------------------------------------------------------------------
# Single fused kernel: synthetic-BERT (both towers) + mention-score head +
# span-average head.  Gridless; every operand stays in VMEM.
# --------------------------------------------------------------------------
def _fused_kernel(ids_ctxt_ref, table_ctxt_ref, encw_ctxt_ref, encb_ctxt_ref,
                  bound_w_ref, selt_ref, pool_ref, maskf_ref, bias_k_ref,
                  sel_norm_ref, ids_cand_ref, table_cand_ref, encw_cand_ref,
                  encb_cand_ref, logits_ref, reps_ref, cand_ref):
    # ids_ctxt:  (B*S, 3) int32  [token_id, V+seg_id, V+2+pos]
    # table_*:   (EPAD, H) bf16  stacked [word; seg; pos] embedding table
    # encw_*:    (H, H) bf16     encb_*: (1, H) f32
    # bound_w:   (H, KPAD) bf16  qa_linear weight, cols 0..2 = start/end/mention
    # selt:      (3*B*S, KPAD) f32  [GI; GJ; INSPAN] span masks, batch-tiled
    # pool:      (RL, B*S) f32   block pooling (row b sums batch b's rows)
    # maskf:     (RL, S) f32     attention mask (rows >= B are zero)
    # bias_k:    (1, KPAD) f32   static qa_linear bias per kept span
    # sel_norm:  (RM, B*S) f32   block-diag, count-normalised span-average matrix
    # ids_cand:  (RC, 3) int32   CLS-token ids for the candidate tower (-1 = pad)
    # outputs:   logits (RL, KPAD), reps (RM, H), cand (RC, H)  -- all f32
    BS = ids_ctxt_ref.shape[0]
    EPAD, H = table_ctxt_ref.shape
    S = maskf_ref.shape[1]

    # ---------------- context tower ----------------------------------------
    ids = ids_ctxt_ref[...]
    lane = lax.broadcasted_iota(jnp.int32, (BS, EPAD), 1)
    onehot = ((lane == ids[:, 0:1]) | (lane == ids[:, 1:2])
              | (lane == ids[:, 2:3])).astype(jnp.bfloat16)
    emb = jnp.dot(onehot, table_ctxt_ref[...],
                  preferred_element_type=jnp.float32)                  # (BS, H)
    x = jnp.tanh(jnp.dot(emb.astype(jnp.bfloat16), encw_ctxt_ref[...],
                         preferred_element_type=jnp.float32)
                 + encb_ctxt_ref[...])                                 # (BS, H)

    # qa_linear head (bias folded into bias_k), lane-dense weight.
    head = jnp.dot(x.astype(jnp.bfloat16), bound_w_ref[...],
                   preferred_element_type=jnp.float32)                 # (BS, KPAD)

    # kept[b,k] = start_b[i_k] + end_b[j_k] + sum_{t in span_k} mention_b[t]
    selt = selt_ref[...]
    gi_t = selt[0:BS]
    gj_t = selt[BS:2 * BS]
    insp_t = selt[2 * BS:3 * BS]
    prod = (gi_t * head[:, 0:1] + gj_t * head[:, 1:2]
            + insp_t * head[:, 2:3])                                   # (BS, KPAD)
    kept = jnp.dot(pool_ref[...], prod,
                   preferred_element_type=jnp.float32) + bias_k_ref[...]
    # valid = (span size > 0, encoded as a non-empty GJ column) & mask[j_k]
    validf = jnp.dot(maskf_ref[...], selt[BS:BS + S],
                     preferred_element_type=jnp.float32)               # (RL, KPAD)
    logits_ref[...] = jnp.where(validf > 0.0, kept, -jnp.inf)

    # all_avg span embeddings: one block-diagonal matmul (exact division folded
    # into sel_norm host-side).
    reps_ref[...] = jnp.dot(sel_norm_ref[...], x,
                            preferred_element_type=jnp.float32)        # (RM, H)

    # ---------------- candidate tower (CLS row only; encoder is token-wise) --
    idc = ids_cand_ref[...]
    lane_c = lax.broadcasted_iota(jnp.int32, (idc.shape[0], EPAD), 1)
    oh_c = ((lane_c == idc[:, 0:1]) | (lane_c == idc[:, 1:2])
            | (lane_c == idc[:, 2:3])).astype(jnp.bfloat16)
    emb_c = jnp.dot(oh_c, table_cand_ref[...],
                    preferred_element_type=jnp.float32)
    cand_ref[...] = jnp.tanh(jnp.dot(emb_c.astype(jnp.bfloat16),
                                     encw_cand_ref[...],
                                     preferred_element_type=jnp.float32)
                             + encb_cand_ref[...])


# --------------------------------------------------------------------------
# BiEncoderModule (Pallas version)
# --------------------------------------------------------------------------
class BiEncoderModulePallas:
    EPAD = 128  # stacked embedding-table rows (vocab + 2 segments + seq), padded

    def __init__(self, key, vocab=64, seq=8, hidden=32, max_mention_length=4):
        assert vocab + 2 + seq <= self.EPAD
        assert seq % 8 == 0, "kernel assumes S is sublane-aligned (multiple of 8)"
        self.vocab, self.seq, self.hidden = vocab, seq, hidden
        self.max_mention_length = max_mention_length
        ks = jax.random.split(key, 12)
        s = 0.02

        def make_table(kw, kseg, kpos):
            t = np.zeros((self.EPAD, hidden), np.float32)
            t[:vocab] = s * np.asarray(jax.random.normal(kw, (vocab, hidden)))
            t[vocab:vocab + 2] = s * np.asarray(jax.random.normal(kseg, (2, hidden)))
            t[vocab + 2:vocab + 2 + seq] = \
                s * np.asarray(jax.random.normal(kpos, (seq, hidden)))
            return jnp.asarray(t, jnp.bfloat16)

        # synthetic encoders (mention_aggregation_type = "all_avg",
        # scoring_method = "qa_linear"); bf16 MXU operands, f32 biases.
        self.table_ctxt = make_table(ks[0], ks[1], ks[2])
        self.encw_ctxt = jnp.asarray(
            s * jax.random.normal(ks[3], (hidden, hidden)), jnp.bfloat16)
        self.encb_ctxt = jnp.asarray(
            s * jax.random.normal(ks[4], (1, hidden)), jnp.float32)
        self.table_cand = make_table(ks[5], ks[6], ks[7])
        self.encw_cand = jnp.asarray(
            s * jax.random.normal(ks[8], (hidden, hidden)), jnp.bfloat16)
        self.encb_cand = jnp.asarray(
            s * jax.random.normal(ks[9], (1, hidden)), jnp.float32)

        # MentionScoresHead qa_linear: Linear(H, 3), padded to lane-dense cols.
        bound_w = s * np.asarray(jax.random.normal(ks[10], (hidden, 3)))
        bound_b = s * np.asarray(jax.random.normal(ks[11], (3,)))

        # Static filter_by_mention_size span enumeration (i outer, j inner,
        # keep j - i <= L).  The reference keeps j < i pairs too (size <= 0,
        # always -inf), so the width/ordering matches exactly.
        S, L = seq, max_mention_length
        pairs = [(i, j) for i in range(S) for j in range(S) if (j - i) <= L]
        K = len(pairs)
        KPAD = max(128, ((K + 127) // 128) * 128)
        gi = np.zeros((S, KPAD), np.float32)
        gj = np.zeros((S, KPAD), np.float32)
        insp = np.zeros((S, KPAD), np.float32)
        bias_k = np.zeros((1, KPAD), np.float32)
        for k, (i, j) in enumerate(pairs):
            gi[i, k] = 1.0
            if j >= i:  # size <= 0 spans keep an all-zero GJ column -> -inf
                gj[j, k] = 1.0
                insp[i:j + 1, k] = 1.0
                bias_k[0, k] = bound_b[0] + bound_b[1] + (j - i + 1) * bound_b[2]
        self.num_kept, self.kpad = K, KPAD
        self._gi, self._gj, self._insp = gi, gj, insp
        self.bias_k = jnp.asarray(bias_k)
        bw = np.zeros((hidden, KPAD), np.float32)
        bw[:, :3] = bound_w
        self.bound_w = jnp.asarray(bw, jnp.bfloat16)
        self.kept_bounds = jnp.asarray(np.asarray(pairs, np.int32))     # (K, 2)
        self._const_cache = {}

    # batch-size-dependent static constants (tiled span masks + pooling matrix)
    def _batch_consts(self, B):
        if B not in self._const_cache:
            S = self.seq
            selt = np.concatenate([np.tile(self._gi, (B, 1)),
                                   np.tile(self._gj, (B, 1)),
                                   np.tile(self._insp, (B, 1))], axis=0)
            pool = np.zeros((_round8(B), B * S), np.float32)
            for b in range(B):
                pool[b, b * S:(b + 1) * S] = 1.0
            self._const_cache[B] = (jnp.asarray(selt), jnp.asarray(pool))
        return self._const_cache[B]

    # ---- fused forward (both towers, one pallas_call) -----------------------
    def _forward_fused(self, token_idx_ctxt, segment_idx_ctxt, mask_ctxt,
                       gold_mention_bounds, token_idx_cands, segment_idx_cands):
        B, S = token_idx_ctxt.shape
        Bc = token_idx_cands.shape[0]
        H, V = self.hidden, self.vocab
        M = gold_mention_bounds.shape[1]
        K, KPAD, EPAD = self.num_kept, self.kpad, self.EPAD
        RL, RM, RC = _round8(B), _round8(B * M), _round8(Bc)
        selt, pool = self._batch_consts(B)

        # tiny per-call input prep (ids, mask, span-average matrix)
        ids_ctxt = jnp.stack(
            [token_idx_ctxt.reshape(-1).astype(jnp.int32),
             segment_idx_ctxt.reshape(-1).astype(jnp.int32) + V,
             jnp.tile(jnp.arange(S, dtype=jnp.int32), (B,)) + V + 2], axis=1)
        ids_cand = jnp.stack(
            [token_idx_cands[:, 0].astype(jnp.int32),
             segment_idx_cands[:, 0].astype(jnp.int32) + V,
             jnp.full((Bc,), V + 2, jnp.int32)], axis=1)
        ids_cand = jnp.pad(ids_cand, ((0, RC - Bc), (0, 0)), constant_values=-1)
        maskf = jnp.pad(mask_ctxt.astype(jnp.float32), ((0, RL - B), (0, 0)))

        # block-diagonal, count-normalised span-average selection (gold bounds)
        t = jnp.arange(S, dtype=jnp.int32)
        st = gold_mention_bounds[..., 0].astype(jnp.int32)
        en = gold_mention_bounds[..., 1].astype(jnp.int32)
        inb = ((t[None, None, :] >= st[:, :, None])
               & (t[None, None, :] <= en[:, :, None])).astype(jnp.float32)
        cnt = jnp.maximum(jnp.sum(inb, axis=-1, keepdims=True), 1.0)
        # TODO(synk): zero-length/padded mentions give a zero rep here, whereas
        #             the reference divides by zero (NaN); downstream masking is
        #             assumed.
        eye = jnp.eye(B, dtype=jnp.float32)
        sel_norm = (inb / cnt)[:, :, None, :] * eye[:, None, :, None]
        sel_norm = jnp.pad(sel_norm.reshape(B * M, B * S),
                           ((0, RM - B * M), (0, 0)))

        vmem = pl.BlockSpec(memory_space=pltpu.MemorySpace.VMEM)
        inputs = (ids_ctxt, self.table_ctxt, self.encw_ctxt, self.encb_ctxt,
                  self.bound_w, selt, pool, maskf, self.bias_k, sel_norm,
                  ids_cand, self.table_cand, self.encw_cand, self.encb_cand)
        out_shape = (jax.ShapeDtypeStruct((RL, KPAD), jnp.float32),
                     jax.ShapeDtypeStruct((RM, H), jnp.float32),
                     jax.ShapeDtypeStruct((RC, H), jnp.float32))

        flops = 2 * (B * S * EPAD * H + B * S * H * H + B * S * H * KPAD
                     + RL * B * S * KPAD + RL * S * KPAD + RM * B * S * H
                     + RC * EPAD * H + RC * H * H)
        nbytes = int(sum(int(np.prod(a.shape)) * a.dtype.itemsize for a in inputs)
                     + sum(int(np.prod(o.shape)) * 4 for o in out_shape))

        logits_pad, reps_pad, cand_pad = pl.pallas_call(
            _fused_kernel,
            out_shape=out_shape,
            in_specs=[vmem] * len(inputs),
            out_specs=(vmem, vmem, vmem),
            cost_estimate=pl.CostEstimate(flops=flops,
                                          transcendentals=B * S * H + RC * H,
                                          bytes_accessed=nbytes),
        )(*inputs)
        return logits_pad[:B, :K], reps_pad[:B * M, :], cand_pad[:Bc, :]

    # ---- full forward --------------------------------------------------------
    def forward(self, token_idx_ctxt, segment_idx_ctxt, mask_ctxt,
                token_idx_cands, segment_idx_cands, mask_cands,
                gold_mention_bounds=None, gold_mention_bounds_mask=None,
                get_mention_scores=True):
        # TODO(synk): prune_ctxt_mentions (top-k path) is data-dependent and not
        #             implemented; the gold_mention_bounds path is used.
        if (token_idx_ctxt is None or token_idx_cands is None
                or gold_mention_bounds is None):
            raise NotImplementedError(
                "fused kernel implements the gold-bounds path with both towers")
        _check_left_contiguous(mask_ctxt)
        B = token_idx_ctxt.shape[0]

        logits, reps, cand = self._forward_fused(
            token_idx_ctxt, segment_idx_ctxt, mask_ctxt, gold_mention_bounds,
            token_idx_cands, segment_idx_cands)

        context_outs = {
            "mention_reps": reps,                                      # (B*M, H)
            "mention_bounds": gold_mention_bounds.reshape(-1, 2),
            "mention_masks": gold_mention_bounds_mask.reshape(-1),
            "mention_dims": jnp.asarray(
                gold_mention_bounds_mask.shape, jnp.int32)[None, :],
        }
        if get_mention_scores:
            context_outs["all_mention_logits"] = logits                # (B, K)
            context_outs["all_mention_bounds"] = jnp.broadcast_to(
                self.kept_bounds[None], (B, self.num_kept, 2))
        return context_outs, cand


# --------------------------------------------------------------------------
# main
# --------------------------------------------------------------------------
if __name__ == "__main__":
    bs, S, H, V, M, L = 2, 8, 32, 64, 3, 4
    key = jax.random.PRNGKey(0)
    kp, k1, k2 = jax.random.split(key, 3)

    model = BiEncoderModulePallas(kp, vocab=V, seq=S, hidden=H,
                                  max_mention_length=L)

    token_idx_ctxt = jax.random.randint(k1, (bs, S), 0, V, dtype=jnp.int32)
    segment_idx_ctxt = jnp.zeros((bs, S), jnp.int32)
    lengths = jnp.array([[S], [S - 2]], jnp.int32)
    mask_ctxt = (jnp.arange(S)[None, :] < lengths)                    # (bs, S) bool

    token_idx_cands = jax.random.randint(k2, (bs, S), 0, V, dtype=jnp.int32)
    segment_idx_cands = jnp.zeros((bs, S), jnp.int32)
    mask_cands = jnp.ones((bs, S), jnp.bool_)

    gold_mention_bounds = jnp.array(
        [[[1, 2], [3, 3], [4, 6]],
         [[0, 1], [2, 4], [5, 5]]], jnp.int32)                        # inclusive
    gold_mention_bounds_mask = jnp.ones((bs, M), jnp.bool_)

    context_outs, cand_outs = model.forward(
        token_idx_ctxt, segment_idx_ctxt, mask_ctxt,
        token_idx_cands, segment_idx_cands, mask_cands,
        gold_mention_bounds=gold_mention_bounds,
        gold_mention_bounds_mask=gold_mention_bounds_mask,
        get_mention_scores=True)

    jax.block_until_ready((context_outs, cand_outs))
    print("KERNEL_OK")
</pallas_src>

<mosaic_0001>
module attributes {stable_mosaic.version = 11 : i64} {
  func.func @_fused_kernel(%arg0: memref<16x3xi32, #tpu.memory_space<vmem>>, %arg1: memref<128x32xbf16, #tpu.memory_space<vmem>>, %arg2: memref<32x32xbf16, #tpu.memory_space<vmem>>, %arg3: memref<1x32xf32, #tpu.memory_space<vmem>>, %arg4: memref<32x128xbf16, #tpu.memory_space<vmem>>, %arg5: memref<48x128xf32, #tpu.memory_space<vmem>>, %arg6: memref<8x16xf32, #tpu.memory_space<vmem>>, %arg7: memref<8x8xf32, #tpu.memory_space<vmem>>, %arg8: memref<1x128xf32, #tpu.memory_space<vmem>>, %arg9: memref<8x16xf32, #tpu.memory_space<vmem>>, %arg10: memref<8x3xi32, #tpu.memory_space<vmem>>, %arg11: memref<128x32xbf16, #tpu.memory_space<vmem>>, %arg12: memref<32x32xbf16, #tpu.memory_space<vmem>>, %arg13: memref<1x32xf32, #tpu.memory_space<vmem>>, %arg14: memref<8x128xf32, #tpu.memory_space<vmem>>, %arg15: memref<8x32xf32, #tpu.memory_space<vmem>>, %arg16: memref<8x32xf32, #tpu.memory_space<vmem>>) attributes {dimension_semantics = [], scalar_prefetch = 0 : i64, scratch_operands = 0 : i64, tpu.core_type = #tpu.core_type<tc>} {
    %c0 = arith.constant 0 : index
    %c0_0 = arith.constant 0 : index
    %0 = vector.load %arg0[%c0, %c0_0] : memref<16x3xi32, #tpu.memory_space<vmem>>, vector<16x3xi32>
    %1 = tpu.iota {dimensions = array<i32: 1>} : vector<16x128xi32>
    %2 = vector.extract_strided_slice %0 {offsets = [0, 0], sizes = [16, 1], strides = [1, 1]} : vector<16x3xi32> to vector<16x1xi32>
    %3 = vector.broadcast %2 : vector<16x1xi32> to vector<16x128xi32>
    %4 = arith.cmpi eq, %1, %3 : vector<16x128xi32>
    %5 = vector.extract_strided_slice %0 {offsets = [0, 1], sizes = [16, 1], strides = [1, 1]} : vector<16x3xi32> to vector<16x1xi32>
    %6 = vector.broadcast %5 : vector<16x1xi32> to vector<16x128xi32>
    %7 = arith.cmpi eq, %1, %6 : vector<16x128xi32>
    %8 = arith.ori %4, %7 : vector<16x128xi1>
    %9 = vector.extract_strided_slice %0 {offsets = [0, 2], sizes = [16, 1], strides = [1, 1]} : vector<16x3xi32> to vector<16x1xi32>
    %10 = vector.broadcast %9 : vector<16x1xi32> to vector<16x128xi32>
    %11 = arith.cmpi eq, %1, %10 : vector<16x128xi32>
    %12 = arith.ori %8, %11 : vector<16x128xi1>
    %13 = arith.extui %12 : vector<16x128xi1> to vector<16x128xi32>
    %14 = arith.sitofp %13 : vector<16x128xi32> to vector<16x128xf32>
    %15 = arith.truncf %14 : vector<16x128xf32> to vector<16x128xbf16>
    %c0_1 = arith.constant 0 : index
    %c0_2 = arith.constant 0 : index
    %16 = vector.load %arg1[%c0_1, %c0_2] : memref<128x32xbf16, #tpu.memory_space<vmem>>, vector<128x32xbf16>
    %cst = arith.constant dense<0.000000e+00> : vector<16x32xf32>
    %17 = tpu.matmul %15, %16, %cst {dimension_numbers = #tpu.dot_dimension_numbers<[1], [0], [0], [1], [0, 0, 1, 1], [], []>} : vector<16x128xbf16>, vector<128x32xbf16>, vector<16x32xf32> -> vector<16x32xf32>
    %18 = arith.truncf %17 : vector<16x32xf32> to vector<16x32xbf16>
    %c0_3 = arith.constant 0 : index
    %c0_4 = arith.constant 0 : index
    %19 = vector.load %arg2[%c0_3, %c0_4] : memref<32x32xbf16, #tpu.memory_space<vmem>>, vector<32x32xbf16>
    %cst_5 = arith.constant dense<0.000000e+00> : vector<16x32xf32>
    %20 = tpu.matmul %18, %19, %cst_5 {dimension_numbers = #tpu.dot_dimension_numbers<[1], [0], [0], [1], [0, 0, 1, 1], [], []>} : vector<16x32xbf16>, vector<32x32xbf16>, vector<16x32xf32> -> vector<16x32xf32>
    %c0_6 = arith.constant 0 : index
    %c0_7 = arith.constant 0 : index
    %21 = vector.load %arg3[%c0_6, %c0_7] : memref<1x32xf32, #tpu.memory_space<vmem>>, vector<1x32xf32>
    %22 = vector.broadcast %21 : vector<1x32xf32> to vector<16x32xf32>
    %23 = arith.addf %20, %22 : vector<16x32xf32>
    %24 = math.tanh %23 : vector<16x32xf32>
    %25 = arith.truncf %24 : vector<16x32xf32> to vector<16x32xbf16>
    %c0_8 = arith.constant 0 : index
    %c0_9 = arith.constant 0 : index
    %26 = vector.load %arg4[%c0_8, %c0_9] : memref<32x128xbf16, #tpu.memory_space<vmem>>, vector<32x128xbf16>
    %cst_10 = arith.constant dense<0.000000e+00> : vector<16x128xf32>
    %27 = tpu.matmul %25, %26, %cst_10 {dimension_numbers = #tpu.dot_dimension_numbers<[1], [0], [0], [1], [0, 0, 1, 1], [], []>} : vector<16x32xbf16>, vector<32x128xbf16>, vector<16x128xf32> -> vector<16x128xf32>
    %c0_11 = arith.constant 0 : index
    %c0_12 = arith.constant 0 : index
    %28 = vector.load %arg5[%c0_11, %c0_12] : memref<48x128xf32, #tpu.memory_space<vmem>>, vector<48x128xf32>
    %29 = vector.extract_strided_slice %28 {offsets = [0, 0], sizes = [16, 128], strides = [1, 1]} : vector<48x128xf32> to vector<16x128xf32>
    %30 = vector.extract_strided_slice %28 {offsets = [16, 0], sizes = [16, 128], strides = [1, 1]} : vector<48x128xf32> to vector<16x128xf32>
    %31 = vector.extract_strided_slice %28 {offsets = [32, 0], sizes = [16, 128], strides = [1, 1]} : vector<48x128xf32> to vector<16x128xf32>
    %32 = vector.extract_strided_slice %27 {offsets = [0, 0], sizes = [16, 1], strides = [1, 1]} : vector<16x128xf32> to vector<16x1xf32>
    %33 = vector.broadcast %32 : vector<16x1xf32> to vector<16x128xf32>
    %34 = arith.mulf %29, %33 : vector<16x128xf32>
    %35 = vector.extract_strided_slice %27 {offsets = [0, 1], sizes = [16, 1], strides = [1, 1]} : vector<16x128xf32> to vector<16x1xf32>
    %36 = vector.broadcast %35 : vector<16x1xf32> to vector<16x128xf32>
    %37 = arith.mulf %30, %36 : vector<16x128xf32>
    %38 = arith.addf %34, %37 : vector<16x128xf32>
    %39 = vector.extract_strided_slice %27 {offsets = [0, 2], sizes = [16, 1], strides = [1, 1]} : vector<16x128xf32> to vector<16x1xf32>
    %40 = vector.broadcast %39 : vector<16x1xf32> to vector<16x128xf32>
    %41 = arith.mulf %31, %40 : vector<16x128xf32>
    %42 = arith.addf %38, %41 : vector<16x128xf32>
    %c0_13 = arith.constant 0 : index
    %c0_14 = arith.constant 0 : index
    %43 = vector.load %arg6[%c0_13, %c0_14] : memref<8x16xf32, #tpu.memory_space<vmem>>, vector<8x16xf32>
    %cst_15 = arith.constant dense<0.000000e+00> : vector<8x128xf32>
    %44 = tpu.matmul %43, %42, %cst_15 {dimension_numbers = #tpu.dot_dimension_numbers<[1], [0], [0], [1], [0, 0, 1, 1], [], []>} : vector<8x16xf32>, vector<16x128xf32>, vector<8x128xf32> -> vector<8x128xf32>
    %c0_16 = arith.constant 0 : index
    %c0_17 = arith.constant 0 : index
    %45 = vector.load %arg8[%c0_16, %c0_17] : memref<1x128xf32, #tpu.memory_space<vmem>>, vector<1x128xf32>
    %46 = vector.broadcast %45 : vector<1x128xf32> to vector<8x128xf32>
    %47 = arith.addf %44, %46 : vector<8x128xf32>
    %c0_18 = arith.constant 0 : index
    %c0_19 = arith.constant 0 : index
    %48 = vector.load %arg7[%c0_18, %c0_19] : memref<8x8xf32, #tpu.memory_space<vmem>>, vector<8x8xf32>
    %49 = vector.extract_strided_slice %28 {offsets = [16, 0], sizes = [8, 128], strides = [1, 1]} : vector<48x128xf32> to vector<8x128xf32>
    %cst_20 = arith.constant dense<0.000000e+00> : vector<8x128xf32>
    %50 = tpu.matmul %48, %49, %cst_20 {dimension_numbers = #tpu.dot_dimension_numbers<[1], [0], [0], [1], [0, 0, 1, 1], [], []>} : vector<8x8xf32>, vector<8x128xf32>, vector<8x128xf32> -> vector<8x128xf32>
    %cst_21 = arith.constant 0.000000e+00 : f32
    %51 = vector.broadcast %cst_21 : f32 to vector<8x128xf32>
    %52 = arith.cmpf ogt, %50, %51 : vector<8x128xf32>
    %cst_22 = arith.constant 0xFF800000 : f32
    %53 = vector.broadcast %cst_22 : f32 to vector<8x128xf32>
    %54 = arith.select %52, %47, %53 : vector<8x128xi1>, vector<8x128xf32>
    %c0_23 = arith.constant 0 : index
    %c0_24 = arith.constant 0 : index
    %55 = vector.load %arg14[%c0_23, %c0_24] : memref<8x128xf32, #tpu.memory_space<vmem>>, vector<8x128xf32>
    tpu.vector_store %arg14[%c0_23, %c0_24], %54 {strides = array<i32>} : memref<8x128xf32, #tpu.memory_space<vmem>>, vector<8x128xf32>,
    %c0_25 = arith.constant 0 : index
    %c0_26 = arith.constant 0 : index
    %56 = vector.load %arg9[%c0_25, %c0_26] : memref<8x16xf32, #tpu.memory_space<vmem>>, vector<8x16xf32>
    %cst_27 = arith.constant dense<0.000000e+00> : vector<8x32xf32>
    %57 = tpu.matmul %56, %24, %cst_27 {dimension_numbers = #tpu.dot_dimension_numbers<[1], [0], [0], [1], [0, 0, 1, 1], [], []>} : vector<8x16xf32>, vector<16x32xf32>, vector<8x32xf32> -> vector<8x32xf32>
    %c0_28 = arith.constant 0 : index
    %c0_29 = arith.constant 0 : index
    %58 = vector.load %arg15[%c0_28, %c0_29] : memref<8x32xf32, #tpu.memory_space<vmem>>, vector<8x32xf32>
    tpu.vector_store %arg15[%c0_28, %c0_29], %57 {strides = array<i32>} : memref<8x32xf32, #tpu.memory_space<vmem>>, vector<8x32xf32>,
    %c0_30 = arith.constant 0 : index
    %c0_31 = arith.constant 0 : index
    %59 = vector.load %arg10[%c0_30, %c0_31] : memref<8x3xi32, #tpu.memory_space<vmem>>, vector<8x3xi32>
    %60 = tpu.iota {dimensions = array<i32: 1>} : vector<8x128xi32>
    %61 = vector.extract_strided_slice %59 {offsets = [0, 0], sizes = [8, 1], strides = [1, 1]} : vector<8x3xi32> to vector<8x1xi32>
    %62 = vector.broadcast %61 : vector<8x1xi32> to vector<8x128xi32>
    %63 = arith.cmpi eq, %60, %62 : vector<8x128xi32>
    %64 = vector.extract_strided_slice %59 {offsets = [0, 1], sizes = [8, 1], strides = [1, 1]} : vector<8x3xi32> to vector<8x1xi32>
    %65 = vector.broadcast %64 : vector<8x1xi32> to vector<8x128xi32>
    %66 = arith.cmpi eq, %60, %65 : vector<8x128xi32>
    %67 = arith.ori %63, %66 : vector<8x128xi1>
    %68 = vector.extract_strided_slice %59 {offsets = [0, 2], sizes = [8, 1], strides = [1, 1]} : vector<8x3xi32> to vector<8x1xi32>
    %69 = vector.broadcast %68 : vector<8x1xi32> to vector<8x128xi32>
    %70 = arith.cmpi eq, %60, %69 : vector<8x128xi32>
    %71 = arith.ori %67, %70 : vector<8x128xi1>
    %72 = arith.extui %71 : vector<8x128xi1> to vector<8x128xi32>
    %73 = arith.sitofp %72 : vector<8x128xi32> to vector<8x128xf32>
    %74 = arith.truncf %73 : vector<8x128xf32> to vector<8x128xbf16>
    %c0_32 = arith.constant 0 : index
    %c0_33 = arith.constant 0 : index
    %75 = vector.load %arg11[%c0_32, %c0_33] : memref<128x32xbf16, #tpu.memory_space<vmem>>, vector<128x32xbf16>
    %cst_34 = arith.constant dense<0.000000e+00> : vector<8x32xf32>
    %76 = tpu.matmul %74, %75, %cst_34 {dimension_numbers = #tpu.dot_dimension_numbers<[1], [0], [0], [1], [0, 0, 1, 1], [], []>} : vector<8x128xbf16>, vector<128x32xbf16>, vector<8x32xf32> -> vector<8x32xf32>
    %77 = arith.truncf %76 : vector<8x32xf32> to vector<8x32xbf16>
    %c0_35 = arith.constant 0 : index
    %c0_36 = arith.constant 0 : index
    %78 = vector.load %arg12[%c0_35, %c0_36] : memref<32x32xbf16, #tpu.memory_space<vmem>>, vector<32x32xbf16>
    %cst_37 = arith.constant dense<0.000000e+00> : vector<8x32xf32>
    %79 = tpu.matmul %77, %78, %cst_37 {dimension_numbers = #tpu.dot_dimension_numbers<[1], [0], [0], [1], [0, 0, 1, 1], [], []>} : vector<8x32xbf16>, vector<32x32xbf16>, vector<8x32xf32> -> vector<8x32xf32>
    %c0_38 = arith.constant 0 : index
    %c0_39 = arith.constant 0 : index
    %80 = vector.load %arg13[%c0_38, %c0_39] : memref<1x32xf32, #tpu.memory_space<vmem>>, vector<1x32xf32>
    %81 = vector.broadcast %80 : vector<1x32xf32> to vector<8x32xf32>
    %82 = arith.addf %79, %81 : vector<8x32xf32>
    %83 = math.tanh %82 : vector<8x32xf32>
    %c0_40 = arith.constant 0 : index
    %c0_41 = arith.constant 0 : index
    %84 = vector.load %arg16[%c0_40, %c0_41] : memref<8x32xf32, #tpu.memory_space<vmem>>, vector<8x32xf32>
    tpu.vector_store %arg16[%c0_40, %c0_41], %83 {strides = array<i32>} : memref<8x32xf32, #tpu.memory_space<vmem>>, vector<8x32xf32>,
    return
  }
}

</mosaic_0001>

<llo_original>
// kernel: tpu_custom_call.1
$region0: #{tpu_custom_call.1}
  #allocation0 [shape = 'u32[]', space=smem, size = 0x4, offset = 0x4, fixed_abs, tag = 'smem constant byte address 0x4 - core index']
  #allocation1 [shape = 'u32[144,128]{1,0:T(1,128)}', space=vmem, size = 0x12000, scoped, tag = 'internal scratch']
  %s0 = inlined_call_operand.vmem [shape: s32[16,3], index: 0, kind: input, shape index: {}]
  %s1 = inlined_call_operand.vmem [shape: bf16[128,32], index: 1, kind: input, shape index: {}]
  %s2 = inlined_call_operand.vmem [shape: bf16[32,32], index: 2, kind: input, shape index: {}]
  %s3 = inlined_call_operand.vmem [shape: f32[1,32], index: 3, kind: input, shape index: {}]
  %s4 = inlined_call_operand.vmem [shape: bf16[32,128], index: 4, kind: input, shape index: {}]
  %s5 = inlined_call_operand.vmem [shape: f32[48,128], index: 5, kind: input, shape index: {}]
  %s6 = inlined_call_operand.vmem [shape: f32[8,16], index: 6, kind: input, shape index: {}]
  %s7 = inlined_call_operand.vmem [shape: f32[8,8], index: 7, kind: input, shape index: {}]
  %s8 = inlined_call_operand.vmem [shape: f32[1,128], index: 8, kind: input, shape index: {}]
  %s9 = inlined_call_operand.vmem [shape: f32[8,16], index: 9, kind: input, shape index: {}]
  %s10 = inlined_call_operand.vmem [shape: s32[8,3], index: 10, kind: input, shape index: {}]
  %s11 = inlined_call_operand.vmem [shape: bf16[128,32], index: 11, kind: input, shape index: {}]
  %s12 = inlined_call_operand.vmem [shape: bf16[32,32], index: 12, kind: input, shape index: {}]
  %s13 = inlined_call_operand.vmem [shape: f32[1,32], index: 13, kind: input, shape index: {}]
  %s14 = inlined_call_operand.hbm [shape: f32[8,128], index: 14, kind: output, shape index: {0}]
  %s15 = inlined_call_operand.hbm [shape: f32[8,32], index: 15, kind: output, shape index: {1}]
  %s16 = inlined_call_operand.hbm [shape: f32[8,32], index: 16, kind: output, shape index: {2}]
  %17 = xla_tuple %s14, %s15, %s16
  %s18 = sld [smem:[#allocation0]]
  $region82: #{tpu_custom_call.1} parent=0
    _
  %s20 = ssub.s32 1, %s18
  %s21 = scalar_select 0, %s20, %s18
  $region1: #{tpu_custom_call.1} parent=0
    #allocation2 [shape = 'u8[4096]{0}', space=vmem, size = 0x1000, scoped, tag = 'output window, operand 0, single buffered']
    #allocation3 [shape = 's32[1]{0}', space=sflag, size = 0x4, scoped, tag = 'scoped memory for tpu_custom_call.1']
    #allocation4 [shape = 'u8[4096]{0}', space=vmem, size = 0x1000, scoped, tag = 'output window, operand 1, single buffered']
    #allocation5 [shape = 's32[1]{0}', space=sflag, size = 0x4, scoped, tag = 'scoped memory for tpu_custom_call.1']
    #allocation6 [shape = 'u8[4096]{0}', space=vmem, size = 0x1000, scoped, tag = 'output window, operand 2, single buffered']
    %22 = vsyncpa [#allocation3], 0
    %23 = vsyncpa [#allocation5], 0
    // Predicated region
    $region2: #{tpu_custom_call.1} parent=1 // pred_check
      _
    $region3: #{tpu_custom_call.1} parent=1 // pred_check_branch
      %25 = sbr.rel (0) target = $region5
    $region4: #{tpu_custom_call.1} parent=1 // pred_region
      _
    $region5: #{tpu_custom_call.1} parent=1 // pred_fallthru
      _
    // Predicated region
    $region6: #{tpu_custom_call.1} parent=1 // pred_check
      _
    $region7: #{tpu_custom_call.1} parent=1 // pred_check_branch
      %27 = sbr.rel (0) target = $region9
    $region8: #{tpu_custom_call.1} parent=1 // pred_region
      _
    $region9: #{tpu_custom_call.1} parent=1 // pred_fallthru
      _
    // Predicated region
    $region10: #{tpu_custom_call.1} parent=1 // pred_check
      _
    $region11: #{tpu_custom_call.1} parent=1 // pred_check_branch
      %29 = sbr.rel (0) target = $region13
    $region12: #{tpu_custom_call.1} parent=1 // pred_region
      _
    $region13: #{tpu_custom_call.1} parent=1 // pred_fallthru
      _
    // Predicated region
    $region14: #{tpu_custom_call.1} parent=1 // pred_check
      _
    $region15: #{tpu_custom_call.1} parent=1 // pred_check_branch
      %31 = sbr.rel (0) target = $region17
    $region16: #{tpu_custom_call.1} parent=1 // pred_region
      _
    $region17: #{tpu_custom_call.1} parent=1 // pred_fallthru
      _
    // Predicated region
    $region18: #{tpu_custom_call.1} parent=1 // pred_check
      _
    $region19: #{tpu_custom_call.1} parent=1 // pred_check_branch
      %33 = sbr.rel (0) target = $region21
    $region20: #{tpu_custom_call.1} parent=1 // pred_region
      _
    $region21: #{tpu_custom_call.1} parent=1 // pred_fallthru
      _
    // Predicated region
    $region22: #{tpu_custom_call.1} parent=1 // pred_check
      _
    $region23: #{tpu_custom_call.1} parent=1 // pred_check_branch
      %35 = sbr.rel (0) target = $region25
    $region24: #{tpu_custom_call.1} parent=1 // pred_region
      _
    $region25: #{tpu_custom_call.1} parent=1 // pred_fallthru
      _
    // Predicated region
    $region26: #{tpu_custom_call.1} parent=1 // pred_check
      _
    $region27: #{tpu_custom_call.1} parent=1 // pred_check_branch
      %37 = sbr.rel (0) target = $region29
    $region28: #{tpu_custom_call.1} parent=1 // pred_region
      _
    $region29: #{tpu_custom_call.1} parent=1 // pred_fallthru
      _
    // Predicated region
    $region30: #{tpu_custom_call.1} parent=1 // pred_check
      _
    $region31: #{tpu_custom_call.1} parent=1 // pred_check_branch
      %39 = sbr.rel (0) target = $region33
    $region32: #{tpu_custom_call.1} parent=1 // pred_region
      _
    $region33: #{tpu_custom_call.1} parent=1 // pred_fallthru
      _
    // Predicated region
    $region34: #{tpu_custom_call.1} parent=1 // pred_check
      _
    $region35: #{tpu_custom_call.1} parent=1 // pred_check_branch
      %41 = sbr.rel (0) target = $region37
    $region36: #{tpu_custom_call.1} parent=1 // pred_region
      _
    $region37: #{tpu_custom_call.1} parent=1 // pred_fallthru
      _
    // Predicated region
    $region38: #{tpu_custom_call.1} parent=1 // pred_check
      _
    $region39: #{tpu_custom_call.1} parent=1 // pred_check_branch
      %43 = sbr.rel (0) target = $region41
    $region40: #{tpu_custom_call.1} parent=1 // pred_region
      _
    $region41: #{tpu_custom_call.1} parent=1 // pred_fallthru
      _
    // Predicated region
    $region42: #{tpu_custom_call.1} parent=1 // pred_check
      _
    $region43: #{tpu_custom_call.1} parent=1 // pred_check_branch
      %45 = sbr.rel (0) target = $region45
    $region44: #{tpu_custom_call.1} parent=1 // pred_region
      _
    $region45: #{tpu_custom_call.1} parent=1 // pred_fallthru
      _
    // Predicated region
    $region46: #{tpu_custom_call.1} parent=1 // pred_check
      _
    $region47: #{tpu_custom_call.1} parent=1 // pred_check_branch
      %47 = sbr.rel (0) target = $region49
    $region48: #{tpu_custom_call.1} parent=1 // pred_region
      _
    $region49: #{tpu_custom_call.1} parent=1 // pred_fallthru
      _
    // Predicated region
    $region50: #{tpu_custom_call.1} parent=1 // pred_check
      _
    $region51: #{tpu_custom_call.1} parent=1 // pred_check_branch
      %49 = sbr.rel (0) target = $region53
    $region52: #{tpu_custom_call.1} parent=1 // pred_region
      _
    $region53: #{tpu_custom_call.1} parent=1 // pred_fallthru
      _
    // Predicated region
    $region54: #{tpu_custom_call.1} parent=1 // pred_check
      _
    $region55: #{tpu_custom_call.1} parent=1 // pred_check_branch
      %51 = sbr.rel (0) target = $region57
    $region56: #{tpu_custom_call.1} parent=1 // pred_region
      _
    $region57: #{tpu_custom_call.1} parent=1 // pred_fallthru
      _
    %v53 = vld [vmem:[%s0] sm:$0xff]
    %v54 = vld [vmem:[%s0 + $0x8] sm:$0xff]
    %v55 = vlaneseq
    %v56 = vand.u32 %v55, 127
    %57 = vset.pattern.permute.xlu0 0
    %58 = vperm.xlu0 %57, %v53
    %v59 = vpop.permute.xlu0 %58
    %60 = vset.pattern.permute.xlu0 0
    %61 = vperm.xlu0 %60, %v54
    %v62 = vpop.permute.xlu0 %61
    %vm63 = vcmp.eq.s32.totalorder %v56, %v59
    %vm64 = vcmp.eq.s32.totalorder %v56, %v62
    %65 = vset.pattern.permute.xlu0 1
    %66 = vperm.xlu0 %65, %v53
    %v67 = vpop.permute.xlu0 %66
    %68 = vset.pattern.permute.xlu0 1
    %69 = vperm.xlu0 %68, %v54
    %v70 = vpop.permute.xlu0 %69
    %vm71 = vcmp.eq.s32.totalorder %v56, %v67
    %vm72 = vcmp.eq.s32.totalorder %v56, %v70
    %vm73 = vmor %vm63, %vm71
    %vm74 = vmor %vm64, %vm72
    %75 = vset.pattern.permute.xlu0 2
    %76 = vperm.xlu0 %75, %v53
    %v77 = vpop.permute.xlu0 %76
    %78 = vset.pattern.permute.xlu0 2
    %79 = vperm.xlu0 %78, %v54
    %v80 = vpop.permute.xlu0 %79
    %vm81 = vcmp.eq.s32.totalorder %v56, %v77
    %vm82 = vcmp.eq.s32.totalorder %v56, %v80
    %vm83 = vmor %vm73, %vm81
    %vm84 = vmor %vm74, %vm82
    %v85 = vsel %vm83, 1, 0
    %v86 = vsel %vm84, 1, 0
    %v87 = vcvt.s32.f32 %v85
    %v88 = vcvt.s32.f32 %v86
    %v89 = vpack.c.bf16 %v88, %v87
    %v90 = vld [vmem:[%s1] sm:$0xf]
    %v91 = vld [vmem:[%s1 + $0x4] sm:$0xf]
    %v92 = vld [vmem:[%s1 + $0x8] sm:$0xf]
    %v93 = vld [vmem:[%s1 + $0xc] sm:$0xf]
    %v94 = vld [vmem:[%s1 + $0x10] sm:$0xf]
    %v95 = vld [vmem:[%s1 + $0x14] sm:$0xf]
    %v96 = vld [vmem:[%s1 + $0x18] sm:$0xf]
    %v97 = vld [vmem:[%s1 + $0x1c] sm:$0xf]
    %v98 = vld [vmem:[%s1 + $0x20] sm:$0xf]
    %v99 = vld [vmem:[%s1 + $0x24] sm:$0xf]
    %v100 = vld [vmem:[%s1 + $0x28] sm:$0xf]
    %v101 = vld [vmem:[%s1 + $0x2c] sm:$0xf]
    %v102 = vld [vmem:[%s1 + $0x30] sm:$0xf]
    %v103 = vld [vmem:[%s1 + $0x34] sm:$0xf]
    %v104 = vld [vmem:[%s1 + $0x38] sm:$0xf]
    %v105 = vld [vmem:[%s1 + $0x3c] sm:$0xf]
    %v122 = vunpack.c.l.b16 %v90
    %v123 = vunpack.c.l.b16 %v91
    %v124 = vunpack.c.l.b16 %v92
    %v125 = vunpack.c.l.b16 %v93
    %v126 = vunpack.c.l.b16 %v94
    %v127 = vunpack.c.l.b16 %v95
    %v128 = vunpack.c.l.b16 %v96
    %v129 = vunpack.c.l.b16 %v97
    %v130 = vunpack.c.l.b16 %v98
    %v131 = vunpack.c.l.b16 %v99
    %v132 = vunpack.c.l.b16 %v100
    %v133 = vunpack.c.l.b16 %v101
    %v134 = vunpack.c.l.b16 %v102
    %v135 = vunpack.c.l.b16 %v103
    %v136 = vunpack.c.l.b16 %v104
    %v137 = vunpack.c.l.b16 %v105
    %v138 = vpack.c.b16 %v123, %v122
    %v139 = vpack.c.b16 %v125, %v124
    %v140 = vpack.c.b16 %v127, %v126
    %v141 = vpack.c.b16 %v129, %v128
    %v142 = vpack.c.b16 %v131, %v130
    %v143 = vpack.c.b16 %v133, %v132
    %v144 = vpack.c.b16 %v135, %v134
    %v145 = vpack.c.b16 %v137, %v136
    %154 = vmatprep.subr.bf16.mxu0 0
    %155 = vmatpush1.bf16.msra.mxu0 %v138
    %156 = vmatprep.subr.bf16.mxu0 0
    %157 = vmatpush1.bf16.msra.mxu0 %v139
    %158 = vmatprep.subr.bf16.mxu0 0
    %159 = vmatpush1.bf16.msra.mxu0 %v140
    %160 = vmatprep.subr.bf16.mxu0 0
    %161 = vmatpush1.bf16.msra.mxu0 %v141
    %162 = vmatprep.subr.bf16.mxu0 0
    %163 = vmatpush1.bf16.msra.mxu0 %v142
    %164 = vmatprep.subr.bf16.mxu0 0
    %165 = vmatpush1.bf16.msra.mxu0 %v143
    %166 = vmatprep.subr.bf16.mxu0 0
    %167 = vmatpush1.bf16.msra.mxu0 %v144
    %168 = vmatprep.subr.bf16.mxu0 0
    %169 = vmatpush1.bf16.msra.mxu0 %v145
    %170 = vmatprep.subr.bf16.mxu0 0
    %171 = vmatpush1.bf16.msra.mxu0 0
    %172 = vmatprep.subr.bf16.mxu0 0
    %173 = vmatpush1.bf16.msra.mxu0 0
    %174 = vmatprep.subr.bf16.mxu0 0
    %175 = vmatpush1.bf16.msra.mxu0 0
    %176 = vmatprep.subr.bf16.mxu0 0
    %177 = vmatpush1.bf16.msra.mxu0 0
    %178 = vmatprep.subr.bf16.mxu0 0
    %179 = vmatpush1.bf16.msra.mxu0 0
    %180 = vmatprep.subr.bf16.mxu0 0
    %181 = vmatpush1.bf16.msra.mxu0 0
    %182 = vmatprep.subr.bf16.mxu0 0
    %183 = vmatpush1.bf16.msra.mxu0 0
    %184 = vmatprep.subr.bf16.mxu0 0
    %185 = vmatpush1.bf16.msra.mxu0 0
    %186 = vmatprep.mubr.bf16.mxu0 0
    %187 = vmatmul.mubr.bf16.gmra.mrb[0].mxu0 %v89
    %v188 = vpop.f32.mrb[0].mxu0
    %v189 = vadd.f32 0.0, %v188
    %v190 = vpop.f32.mrb[0].mxu0
    %v191 = vpop.f32.mrb[0].mxu0
    %v192 = vadd.f32 0.0, %v191
    %v193 = vpop.f32.mrb[0].mxu0
    %194 = vdwg.mxu0
    %v195 = vpack.c.bf16 %v192, %v189
    %v196 = vld [vmem:[%s2] sm:$0xf]
    %v197 = vld [vmem:[%s2 + $0x4] sm:$0xf]
    %v198 = vld [vmem:[%s2 + $0x8] sm:$0xf]
    %v199 = vld [vmem:[%s2 + $0xc] sm:$0xf]
    %v200 = vld [vmem:[%s3] sm:$0x1]
    %v202 = vlaneseq
    %v203 = vshrl.u32 %v202, 7
    %v204 = vsub.s32 0, %v203
    %v205 = vrot.slane %v200, %v204
    %v211 = vunpack.c.l.b16 %v196
    %v212 = vunpack.c.l.b16 %v197
    %v213 = vunpack.c.l.b16 %v198
    %v214 = vunpack.c.l.b16 %v199
    %v215 = vpack.c.b16 %v212, %v211
    %v216 = vpack.c.b16 %v214, %v213
    %vm219 = vcmask 261120
    %v221 = vsel %vm219, %v195, 0
    %223 = vmatprep.subr.bf16.mxu0 0
    %224 = vmatpush1.bf16.msra.mxu0 %v215
    %225 = vmatprep.subr.bf16.mxu0 0
    %226 = vmatpush1.bf16.msra.mxu0 %v216
    %227 = vmatprep.subr.bf16.mxu0 0
    %228 = vmatpush1.bf16.msra.mxu0 0
    %229 = vmatprep.subr.bf16.mxu0 0
    %230 = vmatpush1.bf16.msra.mxu0 0
    %231 = vmatprep.subr.bf16.mxu0 0
    %232 = vmatpush1.bf16.msra.mxu0 0
    %233 = vmatprep.subr.bf16.mxu0 0
    %234 = vmatpush1.bf16.msra.mxu0 0
    %235 = vmatprep.subr.bf16.mxu0 0
    %236 = vmatpush1.bf16.msra.mxu0 0
    %237 = vmatprep.subr.bf16.mxu0 0
    %238 = vmatpush1.bf16.msra.mxu0 0
    %239 = vmatprep.subr.bf16.mxu0 0
    %240 = vmatpush1.bf16.msra.mxu0 0
    %241 = vmatprep.subr.bf16.mxu0 0
    %242 = vmatpush1.bf16.msra.mxu0 0
    %243 = vmatprep.subr.bf16.mxu0 0
    %244 = vmatpush1.bf16.msra.mxu0 0
    %245 = vmatprep.subr.bf16.mxu0 0
    %246 = vmatpush1.bf16.msra.mxu0 0
    %247 = vmatprep.subr.bf16.mxu0 0
    %248 = vmatpush1.bf16.msra.mxu0 0
    %249 = vmatprep.subr.bf16.mxu0 0
    %250 = vmatpush1.bf16.msra.mxu0 0
    %251 = vmatprep.subr.bf16.mxu0 0
    %252 = vmatpush1.bf16.msra.mxu0 0
    %253 = vmatprep.subr.bf16.mxu0 0
    %254 = vmatpush1.bf16.msra.mxu0 0
    %255 = vmatprep.mubr.bf16.mxu0 0
    %256 = vmatmul.mubr.bf16.gmra.mrb[0].mxu0 %v221
    %v257 = vpop.f32.mrb[0].mxu0
    %v258 = vadd.f32 %v205, %v257
    %v259 = vpop.f32.mrb[0].mxu0
    %v260 = vpop.f32.mrb[0].mxu0
    %v261 = vadd.f32 %v205, %v260
    %v262 = vpop.f32.mrb[0].mxu0
    %263 = vdwg.mxu0
    %v264 = vtanh.pop %v258
    %v265 = vtanh.pop %v261
    %v266 = vpack.c.bf16 %v265, %v264
    %v267 = vld [vmem:[%s4] sm:$0xf]
    %v268 = vld [vmem:[%s4 + $0x4] sm:$0xf]
    %v269 = vld [vmem:[%s4 + $0x8] sm:$0xf]
    %v270 = vld [vmem:[%s4 + $0xc] sm:$0xf]
    %v275 = vunpack.c.l.b16 %v267
    %v276 = vunpack.c.l.b16 %v268
    %v277 = vunpack.c.l.b16 %v269
    %v278 = vunpack.c.l.b16 %v270
    %v279 = vpack.c.b16 %v276, %v275
    %v280 = vpack.c.b16 %v278, %v277
    %v284 = vsel %vm219, %v266, 0
    %286 = vmatprep.subr.bf16.mxu0 0
    %287 = vmatpush1.bf16.msra.mxu0 %v279
    %288 = vmatprep.subr.bf16.mxu0 0
    %289 = vmatpush1.bf16.msra.mxu0 %v280
    %290 = vmatprep.subr.bf16.mxu0 0
    %291 = vmatpush1.bf16.msra.mxu0 0
    %292 = vmatprep.subr.bf16.mxu0 0
    %293 = vmatpush1.bf16.msra.mxu0 0
    %294 = vmatprep.subr.bf16.mxu0 0
    %295 = vmatpush1.bf16.msra.mxu0 0
    %296 = vmatprep.subr.bf16.mxu0 0
    %297 = vmatpush1.bf16.msra.mxu0 0
    %298 = vmatprep.subr.bf16.mxu0 0
    %299 = vmatpush1.bf16.msra.mxu0 0
    %300 = vmatprep.subr.bf16.mxu0 0
    %301 = vmatpush1.bf16.msra.mxu0 0
    %302 = vmatprep.subr.bf16.mxu0 0
    %303 = vmatpush1.bf16.msra.mxu0 0
    %304 = vmatprep.subr.bf16.mxu0 0
    %305 = vmatpush1.bf16.msra.mxu0 0
    %306 = vmatprep.subr.bf16.mxu0 0
    %307 = vmatpush1.bf16.msra.mxu0 0
    %308 = vmatprep.subr.bf16.mxu0 0
    %309 = vmatpush1.bf16.msra.mxu0 0
    %310 = vmatprep.subr.bf16.mxu0 0
    %311 = vmatpush1.bf16.msra.mxu0 0
    %312 = vmatprep.subr.bf16.mxu0 0
    %313 = vmatpush1.bf16.msra.mxu0 0
    %314 = vmatprep.subr.bf16.mxu0 0
    %315 = vmatpush1.bf16.msra.mxu0 0
    %316 = vmatprep.subr.bf16.mxu0 0
    %317 = vmatpush1.bf16.msra.mxu0 0
    %318 = vmatprep.mubr.bf16.mxu0 0
    %319 = vmatmul.mubr.bf16.gmra.mrb[0].mxu0 %v284
    %v320 = vpop.f32.mrb[0].mxu0
    %v321 = vadd.f32 0.0, %v320
    %v322 = vpop.f32.mrb[0].mxu0
    %v323 = vpop.f32.mrb[0].mxu0
    %v324 = vadd.f32 0.0, %v323
    %v325 = vpop.f32.mrb[0].mxu0
    %326 = vdwg.mxu0
    %v327 = vld [vmem:[%s5] sm:$0xff]
    %v328 = vld [vmem:[%s5 + $0x8] sm:$0xff]
    %v329 = vld [vmem:[%s5 + $0x10] sm:$0xff]
    %v330 = vld [vmem:[%s5 + $0x18] sm:$0xff]
    %v331 = vld [vmem:[%s5 + $0x20] sm:$0xff]
    %v332 = vld [vmem:[%s5 + $0x28] sm:$0xff]
    %334 = vset.pattern.permute.xlu0 0
    %335 = vperm.xlu0 %334, %v321
    %v336 = vpop.permute.xlu0 %335
    %339 = vset.pattern.permute.xlu0 0
    %340 = vperm.xlu0 %339, %v324
    %v341 = vpop.permute.xlu0 %340
    %v343 = vmul.f32 %v327, %v336
    %v344 = vmul.f32 %v328, %v341
    %345 = vset.pattern.permute.xlu0 1
    %346 = vperm.xlu0 %345, %v321
    %v347 = vpop.permute.xlu0 %346
    %349 = vset.pattern.permute.xlu0 1
    %350 = vperm.xlu0 %349, %v324
    %v351 = vpop.permute.xlu0 %350
    %v353 = vmul.f32 %v329, %v347
    %v354 = vmul.f32 %v330, %v351
    %v355 = vadd.f32 %v343, %v353
    %v356 = vadd.f32 %v344, %v354
    %357 = vset.pattern.permute.xlu0 2
    %358 = vperm.xlu0 %357, %v321
    %v359 = vpop.permute.xlu0 %358
    %361 = vset.pattern.permute.xlu0 2
    %362 = vperm.xlu0 %361, %v324
    %v363 = vpop.permute.xlu0 %362
    %v365 = vmul.f32 %v331, %v359
    %v366 = vmul.f32 %v332, %v363
    %v367 = vadd.f32 %v355, %v365
    %v368 = vadd.f32 %v356, %v366
    %v369 = vld [vmem:[%s6] sm:$0xff]
    %v370 = vld [vmem:[%s8] sm:$0x1]
    %v372 = vlaneseq
    %v373 = vshrl.u32 %v372, 7
    %v374 = vsub.s32 0, %v373
    %v375 = vrot.slane %v370, %v374
    %vm377 = vcmask 130048
    %v379 = vsel %vm377, %v369, 0
    %381 = vmatprep.subr.mxu0 0.0
    %382 = vmatpush1.msra.mxu0 %v367
    %383 = vmatprep.subr.mxu0 0.0
    %384 = vmatpush1.msra.mxu0 %v368
    %385 = vmatprep.subr.mxu0 0.0
    %386 = vmatpush1.msra.mxu0 0.0
    %387 = vmatprep.subr.mxu0 0.0
    %388 = vmatpush1.msra.mxu0 0.0
    %389 = vmatprep.subr.mxu0 0.0
    %390 = vmatpush1.msra.mxu0 0.0
    %391 = vmatprep.subr.mxu0 0.0
    %392 = vmatpush1.msra.mxu0 0.0
    %393 = vmatprep.subr.mxu0 0.0
    %394 = vmatpush1.msra.mxu0 0.0
    %395 = vmatprep.subr.mxu0 0.0
    %396 = vmatpush1.msra.mxu0 0.0
    %397 = vmatprep.subr.mxu0 0.0
    %398 = vmatpush1.msra.mxu0 0.0
    %399 = vmatprep.subr.mxu0 0.0
    %400 = vmatpush1.msra.mxu0 0.0
    %401 = vmatprep.subr.mxu0 0.0
    %402 = vmatpush1.msra.mxu0 0.0
    %403 = vmatprep.subr.mxu0 0.0
    %404 = vmatpush1.msra.mxu0 0.0
    %405 = vmatprep.subr.mxu0 0.0
    %406 = vmatpush1.msra.mxu0 0.0
    %407 = vmatprep.subr.mxu0 0.0
    %408 = vmatpush1.msra.mxu0 0.0
    %409 = vmatprep.subr.mxu0 0.0
    %410 = vmatpush1.msra.mxu0 0.0
    %411 = vmatprep.subr.mxu0 0.0
    %412 = vmatpush1.msra.mxu0 0.0
    %413 = vmatprep.subr.mxu0 0.0
    %414 = vmatpush1.msra.mxu0 0.0
    %415 = vmatprep.subr.mxu0 0.0
    %416 = vmatpush1.msra.mxu0 0.0
    %417 = vmatprep.subr.mxu0 0.0
    %418 = vmatpush1.msra.mxu0 0.0
    %419 = vmatprep.subr.mxu0 0.0
    %420 = vmatpush1.msra.mxu0 0.0
    %421 = vmatprep.subr.mxu0 0.0
    %422 = vmatpush1.msra.mxu0 0.0
    %423 = vmatprep.subr.mxu0 0.0
    %424 = vmatpush1.msra.mxu0 0.0
    %425 = vmatprep.subr.mxu0 0.0
    %426 = vmatpush1.msra.mxu0 0.0
    %427 = vmatprep.subr.mxu0 0.0
    %428 = vmatpush1.msra.mxu0 0.0
    %429 = vmatprep.subr.mxu0 0.0
    %430 = vmatpush1.msra.mxu0 0.0
    %431 = vmatprep.subr.mxu0 0.0
    %432 = vmatpush1.msra.mxu0 0.0
    %433 = vmatprep.subr.mxu0 0.0
    %434 = vmatpush1.msra.mxu0 0.0
    %435 = vmatprep.subr.mxu0 0.0
    %436 = vmatpush1.msra.mxu0 0.0
    %437 = vmatprep.subr.mxu0 0.0
    %438 = vmatpush1.msra.mxu0 0.0
    %439 = vmatprep.subr.mxu0 0.0
    %440 = vmatpush1.msra.mxu0 0.0
    %441 = vmatprep.subr.mxu0 0.0
    %442 = vmatpush1.msra.mxu0 0.0
    %443 = vmatprep.subr.mxu0 0.0
    %444 = vmatpush1.msra.mxu0 0.0
    %445 = vmatprep.mubr.f32.mxu0 0.0
    %446 = vmatmul.mubr.f32.gmra.mrb[0].mxu0 %v379
    %v447 = vpop.f32.mrb[0].mxu0
    %v448 = vadd.f32 %v375, %v447
    %v449 = vpop.f32.mrb[0].mxu0
    %450 = vdwg.mxu0
    %v451 = vld [vmem:[%s7] sm:$0xff]
    %vm452 = vcmask 64512
    %v454 = vsel %vm452, %v451, 0
    %456 = vmatprep.subr.mxu0 0.0
    %457 = vmatpush1.msra.mxu0 %v329
    %458 = vmatprep.subr.mxu0 0.0
    %459 = vmatpush1.msra.mxu0 0.0
    %460 = vmatprep.subr.mxu0 0.0
    %461 = vmatpush1.msra.mxu0 0.0
    %462 = vmatprep.subr.mxu0 0.0
    %463 = vmatpush1.msra.mxu0 0.0
    %464 = vmatprep.subr.mxu0 0.0
    %465 = vmatpush1.msra.mxu0 0.0
    %466 = vmatprep.subr.mxu0 0.0
    %467 = vmatpush1.msra.mxu0 0.0
    %468 = vmatprep.subr.mxu0 0.0
    %469 = vmatpush1.msra.mxu0 0.0
    %470 = vmatprep.subr.mxu0 0.0
    %471 = vmatpush1.msra.mxu0 0.0
    %472 = vmatprep.subr.mxu0 0.0
    %473 = vmatpush1.msra.mxu0 0.0
    %474 = vmatprep.subr.mxu0 0.0
    %475 = vmatpush1.msra.mxu0 0.0
    %476 = vmatprep.subr.mxu0 0.0
    %477 = vmatpush1.msra.mxu0 0.0
    %478 = vmatprep.subr.mxu0 0.0
    %479 = vmatpush1.msra.mxu0 0.0
    %480 = vmatprep.subr.mxu0 0.0
    %481 = vmatpush1.msra.mxu0 0.0
    %482 = vmatprep.subr.mxu0 0.0
    %483 = vmatpush1.msra.mxu0 0.0
    %484 = vmatprep.subr.mxu0 0.0
    %485 = vmatpush1.msra.mxu0 0.0
    %486 = vmatprep.subr.mxu0 0.0
    %487 = vmatpush1.msra.mxu0 0.0
    %488 = vmatprep.subr.mxu0 0.0
    %489 = vmatpush1.msra.mxu0 0.0
    %490 = vmatprep.subr.mxu0 0.0
    %491 = vmatpush1.msra.mxu0 0.0
    %492 = vmatprep.subr.mxu0 0.0
    %493 = vmatpush1.msra.mxu0 0.0
    %494 = vmatprep.subr.mxu0 0.0
    %495 = vmatpush1.msra.mxu0 0.0
    %496 = vmatprep.subr.mxu0 0.0
    %497 = vmatpush1.msra.mxu0 0.0
    %498 = vmatprep.subr.mxu0 0.0
    %499 = vmatpush1.msra.mxu0 0.0
    %500 = vmatprep.subr.mxu0 0.0
    %501 = vmatpush1.msra.mxu0 0.0
    %502 = vmatprep.subr.mxu0 0.0
    %503 = vmatpush1.msra.mxu0 0.0
    %504 = vmatprep.subr.mxu0 0.0
    %505 = vmatpush1.msra.mxu0 0.0
    %506 = vmatprep.subr.mxu0 0.0
    %507 = vmatpush1.msra.mxu0 0.0
    %508 = vmatprep.subr.mxu0 0.0
    %509 = vmatpush1.msra.mxu0 0.0
    %510 = vmatprep.subr.mxu0 0.0
    %511 = vmatpush1.msra.mxu0 0.0
    %512 = vmatprep.subr.mxu0 0.0
    %513 = vmatpush1.msra.mxu0 0.0
    %514 = vmatprep.subr.mxu0 0.0
    %515 = vmatpush1.msra.mxu0 0.0
    %516 = vmatprep.subr.mxu0 0.0
    %517 = vmatpush1.msra.mxu0 0.0
    %518 = vmatprep.subr.mxu0 0.0
    %519 = vmatpush1.msra.mxu0 0.0
    %520 = vmatprep.mubr.f32.mxu0 0.0
    %521 = vmatmul.mubr.f32.gmra.mrb[0].mxu0 %v454
    %v522 = vpop.f32.mrb[0].mxu0
    %v523 = vadd.f32 0.0, %v522
    %v524 = vpop.f32.mrb[0].mxu0
    %525 = vdwg.mxu0
    %vm526 = vcmp.gt.f32.partialorder %v523, 0.0
    %v527 = vsel %vm526, %v448, -inf
    %528 = vst [vmem:[#allocation2] sm:$0xff] %v527
    %v529 = vld [vmem:[%s9] sm:$0xff]
    %v531 = vsel %vm377, %v529, 0
    %533 = vmatprep.subr.mxu0 0.0
    %534 = vmatpush1.msra.mxu0 %v264
    %535 = vmatprep.subr.mxu0 0.0
    %536 = vmatpush1.msra.mxu0 %v265
    %537 = vmatprep.subr.mxu0 0.0
    %538 = vmatpush1.msra.mxu0 0.0
    %539 = vmatprep.subr.mxu0 0.0
    %540 = vmatpush1.msra.mxu0 0.0
    %541 = vmatprep.subr.mxu0 0.0
    %542 = vmatpush1.msra.mxu0 0.0
    %543 = vmatprep.subr.mxu0 0.0
    %544 = vmatpush1.msra.mxu0 0.0
    %545 = vmatprep.subr.mxu0 0.0
    %546 = vmatpush1.msra.mxu0 0.0
    %547 = vmatprep.subr.mxu0 0.0
    %548 = vmatpush1.msra.mxu0 0.0
    %549 = vmatprep.subr.mxu0 0.0
    %550 = vmatpush1.msra.mxu0 0.0
    %551 = vmatprep.subr.mxu0 0.0
    %552 = vmatpush1.msra.mxu0 0.0
    %553 = vmatprep.subr.mxu0 0.0
    %554 = vmatpush1.msra.mxu0 0.0
    %555 = vmatprep.subr.mxu0 0.0
    %556 = vmatpush1.msra.mxu0 0.0
    %557 = vmatprep.subr.mxu0 0.0
    %558 = vmatpush1.msra.mxu0 0.0
    %559 = vmatprep.subr.mxu0 0.0
    %560 = vmatpush1.msra.mxu0 0.0
    %561 = vmatprep.subr.mxu0 0.0
    %562 = vmatpush1.msra.mxu0 0.0
    %563 = vmatprep.subr.mxu0 0.0
    %564 = vmatpush1.msra.mxu0 0.0
    %565 = vmatprep.subr.mxu0 0.0
    %566 = vmatpush1.msra.mxu0 0.0
    %567 = vmatprep.subr.mxu0 0.0
    %568 = vmatpush1.msra.mxu0 0.0
    %569 = vmatprep.subr.mxu0 0.0
    %570 = vmatpush1.msra.mxu0 0.0
    %571 = vmatprep.subr.mxu0 0.0
    %572 = vmatpush1.msra.mxu0 0.0
    %573 = vmatprep.subr.mxu0 0.0
    %574 = vmatpush1.msra.mxu0 0.0
    %575 = vmatprep.subr.mxu0 0.0
    %576 = vmatpush1.msra.mxu0 0.0
    %577 = vmatprep.subr.mxu0 0.0
    %578 = vmatpush1.msra.mxu0 0.0
    %579 = vmatprep.subr.mxu0 0.0
    %580 = vmatpush1.msra.mxu0 0.0
    %581 = vmatprep.subr.mxu0 0.0
    %582 = vmatpush1.msra.mxu0 0.0
    %583 = vmatprep.subr.mxu0 0.0
    %584 = vmatpush1.msra.mxu0 0.0
    %585 = vmatprep.subr.mxu0 0.0
    %586 = vmatpush1.msra.mxu0 0.0
    %587 = vmatprep.subr.mxu0 0.0
    %588 = vmatpush1.msra.mxu0 0.0
    %589 = vmatprep.subr.mxu0 0.0
    %590 = vmatpush1.msra.mxu0 0.0
    %591 = vmatprep.subr.mxu0 0.0
    %592 = vmatpush1.msra.mxu0 0.0
    %593 = vmatprep.subr.mxu0 0.0
    %594 = vmatpush1.msra.mxu0 0.0
    %595 = vmatprep.subr.mxu0 0.0
    %596 = vmatpush1.msra.mxu0 0.0
    %597 = vmatprep.mubr.f32.mxu0 0.0
    %598 = vmatmul.mubr.f32.gmra.mrb[0].mxu0 %v531
    %v599 = vpop.f32.mrb[0].mxu0
    %v600 = vadd.f32 0.0, %v599
    %v601 = vpop.f32.mrb[0].mxu0
    %602 = vdwg.mxu0
    %603 = vst.msk [vmem:[#allocation4] sm:$0xff] %vm219, %v600
    %v604 = vld [vmem:[%s10] sm:$0xff]
    %605 = vset.pattern.permute.xlu0 0
    %606 = vperm.xlu0 %605, %v604
    %v607 = vpop.permute.xlu0 %606
    %vm608 = vcmp.eq.s32.totalorder %v56, %v607
    %609 = vset.pattern.permute.xlu0 1
    %610 = vperm.xlu0 %609, %v604
    %v611 = vpop.permute.xlu0 %610
    %vm612 = vcmp.eq.s32.totalorder %v56, %v611
    %vm613 = vmor %vm608, %vm612
    %614 = vset.pattern.permute.xlu0 2
    %615 = vperm.xlu0 %614, %v604
    %v616 = vpop.permute.xlu0 %615
    %vm617 = vcmp.eq.s32.totalorder %v56, %v616
    %vm618 = vmor %vm613, %vm617
    %v619 = vsel %vm618, 1, 0
    %v620 = vcvt.s32.f32 %v619
    %v621 = vpack.c.bf16 %v620, %v620
    %v622 = vld [vmem:[%s11] sm:$0xf]
    %v623 = vld [vmem:[%s11 + $0x4] sm:$0xf]
    %v624 = vld [vmem:[%s11 + $0x8] sm:$0xf]
    %v625 = vld [vmem:[%s11 + $0xc] sm:$0xf]
    %v626 = vld [vmem:[%s11 + $0x10] sm:$0xf]
    %v627 = vld [vmem:[%s11 + $0x14] sm:$0xf]
    %v628 = vld [vmem:[%s11 + $0x18] sm:$0xf]
    %v629 = vld [vmem:[%s11 + $0x1c] sm:$0xf]
    %v630 = vld [vmem:[%s11 + $0x20] sm:$0xf]
    %v631 = vld [vmem:[%s11 + $0x24] sm:$0xf]
    %v632 = vld [vmem:[%s11 + $0x28] sm:$0xf]
    %v633 = vld [vmem:[%s11 + $0x2c] sm:$0xf]
    %v634 = vld [vmem:[%s11 + $0x30] sm:$0xf]
    %v635 = vld [vmem:[%s11 + $0x34] sm:$0xf]
    %v636 = vld [vmem:[%s11 + $0x38] sm:$0xf]
    %v637 = vld [vmem:[%s11 + $0x3c] sm:$0xf]
    %v654 = vunpack.c.l.b16 %v622
    %v655 = vunpack.c.l.b16 %v623
    %v656 = vunpack.c.l.b16 %v624
    %v657 = vunpack.c.l.b16 %v625
    %v658 = vunpack.c.l.b16 %v626
    %v659 = vunpack.c.l.b16 %v627
    %v660 = vunpack.c.l.b16 %v628
    %v661 = vunpack.c.l.b16 %v629
    %v662 = vunpack.c.l.b16 %v630
    %v663 = vunpack.c.l.b16 %v631
    %v664 = vunpack.c.l.b16 %v632
    %v665 = vunpack.c.l.b16 %v633
    %v666 = vunpack.c.l.b16 %v634
    %v667 = vunpack.c.l.b16 %v635
    %v668 = vunpack.c.l.b16 %v636
    %v669 = vunpack.c.l.b16 %v637
    %v670 = vpack.c.b16 %v655, %v654
    %v671 = vpack.c.b16 %v657, %v656
    %v672 = vpack.c.b16 %v659, %v658
    %v673 = vpack.c.b16 %v661, %v660
    %v674 = vpack.c.b16 %v663, %v662
    %v675 = vpack.c.b16 %v665, %v664
    %v676 = vpack.c.b16 %v667, %v666
    %v677 = vpack.c.b16 %v669, %v668
    %686 = vmatprep.subr.bf16.mxu0 0
    %687 = vmatpush1.bf16.msra.mxu0 %v670
    %688 = vmatprep.subr.bf16.mxu0 0
    %689 = vmatpush1.bf16.msra.mxu0 %v671
    %690 = vmatprep.subr.bf16.mxu0 0
    %691 = vmatpush1.bf16.msra.mxu0 %v672
    %692 = vmatprep.subr.bf16.mxu0 0
    %693 = vmatpush1.bf16.msra.mxu0 %v673
    %694 = vmatprep.subr.bf16.mxu0 0
    %695 = vmatpush1.bf16.msra.mxu0 %v674
    %696 = vmatprep.subr.bf16.mxu0 0
    %697 = vmatpush1.bf16.msra.mxu0 %v675
    %698 = vmatprep.subr.bf16.mxu0 0
    %699 = vmatpush1.bf16.msra.mxu0 %v676
    %700 = vmatprep.subr.bf16.mxu0 0
    %701 = vmatpush1.bf16.msra.mxu0 %v677
    %702 = vmatprep.subr.bf16.mxu0 0
    %703 = vmatpush1.bf16.msra.mxu0 0
    %704 = vmatprep.subr.bf16.mxu0 0
    %705 = vmatpush1.bf16.msra.mxu0 0
    %706 = vmatprep.subr.bf16.mxu0 0
    %707 = vmatpush1.bf16.msra.mxu0 0
    %708 = vmatprep.subr.bf16.mxu0 0
    %709 = vmatpush1.bf16.msra.mxu0 0
    %710 = vmatprep.subr.bf16.mxu0 0
    %711 = vmatpush1.bf16.msra.mxu0 0
    %712 = vmatprep.subr.bf16.mxu0 0
    %713 = vmatpush1.bf16.msra.mxu0 0
    %714 = vmatprep.subr.bf16.mxu0 0
    %715 = vmatpush1.bf16.msra.mxu0 0
    %716 = vmatprep.subr.bf16.mxu0 0
    %717 = vmatpush1.bf16.msra.mxu0 0
    %718 = vmatprep.mubr.bf16.mxu0 0
    %719 = vmatmul.mubr.bf16.gmra.mrb[0].mxu0 %v621
    %v720 = vpop.f32.mrb[0].mxu0
    %v721 = vadd.f32 0.0, %v720
    %v722 = vpop.f32.mrb[0].mxu0
    %v723 = vpop.f32.mrb[0].mxu0
    %v724 = vpop.f32.mrb[0].mxu0
    %725 = vdwg.mxu0
    %v726 = vpack.c.bf16 %v721, %v721
    %v727 = vld [vmem:[%s12] sm:$0xf]
    %v728 = vld [vmem:[%s12 + $0x4] sm:$0xf]
    %v729 = vld [vmem:[%s12 + $0x8] sm:$0xf]
    %v730 = vld [vmem:[%s12 + $0xc] sm:$0xf]
    %v731 = vld [vmem:[%s13] sm:$0x1]
    %v733 = vlaneseq
    %v734 = vshrl.u32 %v733, 7
    %v735 = vsub.s32 0, %v734
    %v736 = vrot.slane %v731, %v735
    %v742 = vunpack.c.l.b16 %v727
    %v743 = vunpack.c.l.b16 %v728
    %v744 = vunpack.c.l.b16 %v729
    %v745 = vunpack.c.l.b16 %v730
    %v746 = vpack.c.b16 %v743, %v742
    %v747 = vpack.c.b16 %v745, %v744
    %v751 = vsel %vm219, %v726, 0
    %753 = vmatprep.subr.bf16.mxu0 0
    %754 = vmatpush1.bf16.msra.mxu0 %v746
    %755 = vmatprep.subr.bf16.mxu0 0
    %756 = vmatpush1.bf16.msra.mxu0 %v747
    %757 = vmatprep.subr.bf16.mxu0 0
    %758 = vmatpush1.bf16.msra.mxu0 0
    %759 = vmatprep.subr.bf16.mxu0 0
    %760 = vmatpush1.bf16.msra.mxu0 0
    %761 = vmatprep.subr.bf16.mxu0 0
    %762 = vmatpush1.bf16.msra.mxu0 0
    %763 = vmatprep.subr.bf16.mxu0 0
    %764 = vmatpush1.bf16.msra.mxu0 0
    %765 = vmatprep.subr.bf16.mxu0 0
    %766 = vmatpush1.bf16.msra.mxu0 0
    %767 = vmatprep.subr.bf16.mxu0 0
    %768 = vmatpush1.bf16.msra.mxu0 0
    %769 = vmatprep.subr.bf16.mxu0 0
    %770 = vmatpush1.bf16.msra.mxu0 0
    %771 = vmatprep.subr.bf16.mxu0 0
    %772 = vmatpush1.bf16.msra.mxu0 0
    %773 = vmatprep.subr.bf16.mxu0 0
    %774 = vmatpush1.bf16.msra.mxu0 0
    %775 = vmatprep.subr.bf16.mxu0 0
    %776 = vmatpush1.bf16.msra.mxu0 0
    %777 = vmatprep.subr.bf16.mxu0 0
    %778 = vmatpush1.bf16.msra.mxu0 0
    %779 = vmatprep.subr.bf16.mxu0 0
    %780 = vmatpush1.bf16.msra.mxu0 0
    %781 = vmatprep.subr.bf16.mxu0 0
    %782 = vmatpush1.bf16.msra.mxu0 0
    %783 = vmatprep.subr.bf16.mxu0 0
    %784 = vmatpush1.bf16.msra.mxu0 0
    %785 = vmatprep.mubr.bf16.mxu0 0
    %786 = vmatmul.mubr.bf16.gmra.mrb[0].mxu0 %v751
    %v787 = vpop.f32.mrb[0].mxu0
    %v788 = vadd.f32 %v736, %v787
    %v789 = vpop.f32.mrb[0].mxu0
    %v790 = vpop.f32.mrb[0].mxu0
    %v791 = vpop.f32.mrb[0].mxu0
    %792 = vdwg.mxu0
    %v793 = vtanh.pop %v788
    %794 = vst.msk [vmem:[#allocation6] sm:$0xff] %vm219, %v793
    // Predicated region
    $region58: #{tpu_custom_call.1} parent=1 // pred_check
      _
    $region59: #{tpu_custom_call.1} parent=1 // pred_check_branch
      %796 = sbr.rel (0) target = $region61
    $region60: #{tpu_custom_call.1} parent=1 // pred_region
      %s798 = ssub.s32 128, 128
      %799 = vsyncadd [#allocation3], %s798
      %s801 = sshll.u32 [#allocation2], 4
      %s802 = int_to_ptr.vmem [resolvable:$true] %s801
      %804 = dma.vmem_to_hbm [thread:$0]  %s802, 128, %s14, [#allocation3]
    $region61: #{tpu_custom_call.1} parent=1 // pred_fallthru
      _
    // Predicated region
    $region62: #{tpu_custom_call.1} parent=1 // pred_check
      _
    $region63: #{tpu_custom_call.1} parent=1 // pred_check_branch
      %806 = sbr.rel (0) target = $region65
    $region64: #{tpu_custom_call.1} parent=1 // pred_region
      %s808 = ssub.s32 128, 128
      %809 = vsyncadd [#allocation5], %s808
      %s811 = sshll.u32 [#allocation4], 4
      %s812 = int_to_ptr.vmem [resolvable:$true] %s811
      %814 = dma.vmem_to_hbm [thread:$0]  %s812, 128, %s15, [#allocation5]
    $region65: #{tpu_custom_call.1} parent=1 // pred_fallthru
      _
    // Predicated region
    $region66: #{tpu_custom_call.1} parent=1 // pred_check
      _
    $region67: #{tpu_custom_call.1} parent=1 // pred_check_branch
      %816 = sbr.rel (0) target = $region69
    $region68: #{tpu_custom_call.1} parent=1 // pred_region
      %s818 = ssub.s32 128, 128
      %819 = vsyncadd [#allocation5], %s818
      %s821 = sshll.u32 [#allocation6], 4
      %s822 = int_to_ptr.vmem [resolvable:$true] %s821
      %824 = dma.vmem_to_hbm [thread:$0]  %s822, 128, %s16, [#allocation5]
    $region69: #{tpu_custom_call.1} parent=1 // pred_fallthru
      _
    // Predicated region
    $region70: #{tpu_custom_call.1} parent=1 // pred_check
      _
    $region71: #{tpu_custom_call.1} parent=1 // pred_check_branch
      %826 = sbr.rel (0) target = $region73
    $region72: #{tpu_custom_call.1} parent=1 // pred_region
      %827 = dma.done [#allocation3], 128
    $region73: #{tpu_custom_call.1} parent=1 // pred_fallthru
      _
    // Predicated region
    $region74: #{tpu_custom_call.1} parent=1 // pred_check
      _
    $region75: #{tpu_custom_call.1} parent=1 // pred_check_branch
      %829 = sbr.rel (0) target = $region77
    $region76: #{tpu_custom_call.1} parent=1 // pred_region
      %830 = dma.done [#allocation5], 128
    $region77: #{tpu_custom_call.1} parent=1 // pred_fallthru
      _
    // Predicated region
    $region78: #{tpu_custom_call.1} parent=1 // pred_check
      _
    $region79: #{tpu_custom_call.1} parent=1 // pred_check_branch
      %832 = sbr.rel (0) target = $region81
    $region80: #{tpu_custom_call.1} parent=1 // pred_region
      %833 = dma.done [#allocation5], 128
    $region81: #{tpu_custom_call.1} parent=1 // pred_fallthru
      _
    %834 = vsyncpa [#allocation3], 1
    %835 = vsyncpa [#allocation5], 1

</llo_original>
